<compile_context>
chip_gen: v7x
topology: tpu7x:2x2x1
jax: 0.10.0
libtpu: 0.0.40
codegen_flags: <defaults>
</compile_context>

<pallas_src>
import jax
import jax.numpy as jnp
from jax import lax
from jax.experimental import pallas as pl
from jax.experimental.pallas import tpu as pltpu


def _round_up(x, m):
    return (x + m - 1) // m * m


# ---------------------------------------------------------------------------
# Kernel: one tile of TILE_N token rows.
#   emb_pos_ref : (TILE_N, D_in)  token embeddings (tiled over N)
#   cell_ref    : (TILE_N, D_h)   diora.outside_h rows (tiled over N)
#   mat_ref     : (D_h, D_in)     projection parameter (resident)
#   emb_neg_ref : (K, D_in)       negative-sample embeddings (resident)
#   per_row_ref : (TILE_N, 1) f32 per-token cross-entropy loss (target = 0)
# ---------------------------------------------------------------------------
def _recon_softmax_loss_kernel(emb_pos_ref, cell_ref, mat_ref, emb_neg_ref,
                               per_row_ref):
    cell = cell_ref[...]                     # (T, D_h), native dtype
    mat = mat_ref[...]                       # (D_h, D_in), native dtype

    # cell_proj[n, i] = sum_h cell[n, h] * mat[h, i]
    # One MXU pass per tile; f32 accumulation regardless of input dtype.
    cell_proj = lax.dot_general(
        cell, mat,
        dimension_numbers=(((1,), (0,)), ((), ())),
        preferred_element_type=jnp.float32)  # (T, D_in) f32

    # Positive logit: xp[n] = <emb_pos[n] @ mat.T, cell[n]> = <cell_proj[n], emb_pos[n]>
    emb_pos = emb_pos_ref[...].astype(jnp.float32)
    xp = jnp.sum(cell_proj * emb_pos, axis=-1, keepdims=True)        # (T, 1)

    # Negative logits: xn[n, e] = <emb_neg[e] @ mat.T, cell[n]> = <cell_proj[n], emb_neg[e]>
    # Contract the shared D_in axes directly (no transposed copy of emb_neg).
    emb_neg = emb_neg_ref[...].astype(jnp.float32)                   # (K, D_in), tiny
    xn = lax.dot_general(
        cell_proj, emb_neg,
        dimension_numbers=(((1,), (1,)), ((), ())),
        preferred_element_type=jnp.float32)                          # (T, K)
    # TODO(synk): for production-sized K (hundreds+), pad K to a multiple of 128
    # and mask padded columns with -inf so the exp/max over negatives is lane-dense.

    # CrossEntropy(logits=[xp, xn], target=0):
    #   loss_n = logsumexp([xp_n, xn_n,:]) - xp_n   (no narrow-lane concat)
    m = jnp.maximum(xp, jnp.max(xn, axis=-1, keepdims=True))         # (T, 1)
    sumexp = jnp.exp(xp - m) + jnp.sum(jnp.exp(xn - m), axis=-1, keepdims=True)
    per_row_ref[...] = jnp.log(sumexp) + m - xp                      # (T, 1) f32


def reconstruction_softmax_loss(sentences, neg_samples, outside_h, emb_weight,
                                mat, *, compute_dtype=None, tile_n=None):
    """Pallas-backed equivalent of ReconstructionSoftmaxLoss.forward -> scalar loss."""
    B, L = sentences.shape
    K = int(neg_samples.shape[0])
    D_in = int(emb_weight.shape[1])
    D_h = int(mat.shape[0])
    N = B * L

    dt = jnp.dtype(compute_dtype) if compute_dtype is not None else jnp.dtype(emb_weight.dtype)
    itemsize = dt.itemsize

    # Glue: embedding gather + reshape/slice (data-dependent gather stays in JAX).
    emb_pos = emb_weight[sentences].reshape(N, D_in).astype(dt)      # (N, D_in)
    emb_neg = emb_weight[neg_samples].reshape(K, D_in).astype(dt)    # (K, D_in)
    cell = outside_h[:, :L].reshape(N, D_h).astype(dt)               # (N, D_h)
    mat_c = mat.astype(dt)                                           # (D_h, D_in)

    # ---- Tile sizing: keep the per-step footprint (2x double-buffered input
    # tiles + f32 intermediates) comfortably under the default scoped VMEM
    # limit on every generation (v7x has the smallest VMEM: 64 MiB physical).
    if tile_n is None:
        budget_bytes = 8 << 20  # per-step working set target
        per_row_bytes = 2 * (D_in + D_h) * itemsize + (D_in + K + 8) * 4
        tile_n = max(8, min(1024, budget_bytes // max(per_row_bytes, 1)))
        tile_n -= tile_n % 8
    tile_n = int(min(tile_n, _round_up(N, 8)))
    N_pad = _round_up(N, tile_n)

    if N_pad != N:
        pad = N_pad - N
        emb_pos = jnp.pad(emb_pos, ((0, pad), (0, 0)))
        cell = jnp.pad(cell, ((0, pad), (0, 0)))

    grid = (N_pad // tile_n,)

    per_row = pl.pallas_call(
        _recon_softmax_loss_kernel,
        out_shape=jax.ShapeDtypeStruct((N_pad, 1), jnp.float32),
        grid=grid,
        in_specs=[
            pl.BlockSpec((tile_n, D_in), lambda i: (i, 0)),   # emb_pos (tiled)
            pl.BlockSpec((tile_n, D_h), lambda i: (i, 0)),    # cell    (tiled)
            pl.BlockSpec((D_h, D_in), lambda i: (0, 0)),      # mat     (resident)
            pl.BlockSpec((K, D_in), lambda i: (0, 0)),        # emb_neg (resident)
        ],
        out_specs=pl.BlockSpec((tile_n, 1), lambda i: (i, 0)),
        compiler_params=pltpu.CompilerParams(
            dimension_semantics=("parallel",)),               # no cross-tile deps
        cost_estimate=pl.CostEstimate(
            flops=int(2 * N_pad * D_h * D_in + 2 * N_pad * D_in * (K + 1)),
            transcendentals=int(N_pad * (K + 2)),
            bytes_accessed=int((N_pad * (D_in + D_h) + D_h * D_in + K * D_in)
                               * itemsize + N_pad * 4),
        ),
    )(emb_pos, cell, mat_c, emb_neg)

    # Final mean over the *true* N rows (padded rows masked out here).
    return jnp.mean(per_row[:N, 0])


def _reference(sentences, neg_samples, outside_h, emb_weight, mat):
    """Pure-JAX mirror of the PyTorch forward (for correctness checking)."""
    B, L = sentences.shape
    emb_pos = emb_weight[sentences]                       # (B, L, D_in)
    emb_neg = emb_weight[neg_samples][None]               # (1, K, D_in)
    cell = outside_h[:, :L].reshape(B, L, 1, -1)          # (B, L, 1, D_h)
    proj_pos = jnp.matmul(emb_pos, mat.T)
    proj_neg = jnp.matmul(emb_neg, mat.T)
    xp = jnp.einsum('abc,abxc->abx', proj_pos, cell)
    xn = jnp.einsum('zec,abxc->abe', proj_neg, cell)
    score = jnp.concatenate([xp, xn], axis=2).reshape(B * L, -1)
    logp = jax.nn.log_softmax(score, axis=-1)
    return -jnp.mean(logp[:, 0])


if __name__ == "__main__":
    # Small shapes consistent with the module.
    B, L = 2, 8            # sentences: (batch, length)
    L_total = 10           # diora.outside_h second dim (>= L, sliced to :L)
    vocab = 20
    input_size = 32        # embedding dim
    size = 32              # diora hidden dim (rows of self.mat)
    k_neg = 3

    key = jax.random.PRNGKey(0)
    k1, k2, k3, k4, k5 = jax.random.split(key, 5)

    # Deterministic "parameters" (reset_parameters uses normal_()).
    emb_weight = jax.random.normal(k1, (vocab, input_size), dtype=jnp.float32)
    mat = jax.random.normal(k2, (size, input_size), dtype=jnp.float32)

    # Deterministic inputs.
    sentences = jax.random.randint(k3, (B, L), 0, vocab, dtype=jnp.int32)
    neg_samples = jax.random.randint(k4, (k_neg,), 0, vocab, dtype=jnp.int32)
    outside_h = jax.random.normal(k5, (B, L_total, size), dtype=jnp.float32)

    ref = _reference(sentences, neg_samples, outside_h, emb_weight, mat)

    # f32 path (tolerance accounts for differing matmul association order and
    # the MXU's default reduced-precision f32 dot on TPU).
    loss = reconstruction_softmax_loss(sentences, neg_samples, outside_h,
                                       emb_weight, mat)
    loss = jax.block_until_ready(loss)
    assert jnp.isfinite(loss), loss
    assert jnp.allclose(loss, ref, rtol=2e-2, atol=2e-2), (loss, ref)

    # bf16-traffic path (halves HBM bytes; MXU still accumulates in f32).
    loss_bf16 = reconstruction_softmax_loss(sentences, neg_samples, outside_h,
                                            emb_weight, mat,
                                            compute_dtype=jnp.bfloat16)
    loss_bf16 = jax.block_until_ready(loss_bf16)
    assert jnp.allclose(loss_bf16, ref, rtol=1e-1, atol=1e-1), (loss_bf16, ref)

    print("KERNEL_OK")
</pallas_src>

<mosaic_0001>
module attributes {stable_mosaic.version = 11 : i64} {
  func.func @_recon_softmax_loss_kernel(%arg0: i32, %arg1: memref<16x32xf32, #tpu.memory_space<vmem>>, %arg2: memref<16x32xf32, #tpu.memory_space<vmem>>, %arg3: memref<32x32xf32, #tpu.memory_space<vmem>>, %arg4: memref<3x32xf32, #tpu.memory_space<vmem>>, %arg5: memref<16x1xf32, #tpu.memory_space<vmem>>) attributes {dimension_semantics = [#tpu.dimension_semantics<parallel>], iteration_bounds = array<i64: 1>, scalar_prefetch = 0 : i64, scratch_operands = 0 : i64, tpu.core_type = #tpu.core_type<tc>, window_params = [{transform_indices = @transform_0, window_bounds = array<i64: 16, 32>}, {transform_indices = @transform_1, window_bounds = array<i64: 16, 32>}, {pipeline_mode = #tpu.pipeline_mode<synchronous>, transform_indices = @transform_2, window_bounds = array<i64: 32, 32>}, {pipeline_mode = #tpu.pipeline_mode<synchronous>, transform_indices = @transform_3, window_bounds = array<i64: 3, 32>}, {transform_indices = @transform_4, window_bounds = array<i64: 16, 1>}]} {
    %c0 = arith.constant 0 : index
    %c0_0 = arith.constant 0 : index
    %0 = vector.load %arg2[%c0, %c0_0] : memref<16x32xf32, #tpu.memory_space<vmem>>, vector<16x32xf32>
    %c0_1 = arith.constant 0 : index
    %c0_2 = arith.constant 0 : index
    %1 = vector.load %arg3[%c0_1, %c0_2] : memref<32x32xf32, #tpu.memory_space<vmem>>, vector<32x32xf32>
    %cst = arith.constant dense<0.000000e+00> : vector<16x32xf32>
    %2 = tpu.matmul %0, %1, %cst {dimension_numbers = #tpu.dot_dimension_numbers<[1], [0], [0], [1], [0, 0, 1, 1], [], []>} : vector<16x32xf32>, vector<32x32xf32>, vector<16x32xf32> -> vector<16x32xf32>
    %c0_3 = arith.constant 0 : index
    %c0_4 = arith.constant 0 : index
    %3 = vector.load %arg1[%c0_3, %c0_4] : memref<16x32xf32, #tpu.memory_space<vmem>>, vector<16x32xf32>
    %4 = arith.mulf %2, %3 : vector<16x32xf32>
    %cst_5 = arith.constant dense<0.000000e+00> : vector<16xf32>
    %5 = vector.multi_reduction <add>, %4, %cst_5 [1] : vector<16x32xf32> to vector<16xf32>
    %6 = vector.shape_cast %5 : vector<16xf32> to vector<16x1xf32>
    %c0_6 = arith.constant 0 : index
    %c0_7 = arith.constant 0 : index
    %7 = vector.load %arg4[%c0_6, %c0_7] : memref<3x32xf32, #tpu.memory_space<vmem>>, vector<3x32xf32>
    %cst_8 = arith.constant dense<0.000000e+00> : vector<16x3xf32>
    %8 = tpu.matmul %2, %7, %cst_8 {dimension_numbers = #tpu.dot_dimension_numbers<[1], [1], [0], [0], [0, 0, 1, 0], [], []>} : vector<16x32xf32>, vector<3x32xf32>, vector<16x3xf32> -> vector<16x3xf32>
    %cst_9 = arith.constant dense<0xFF800000> : vector<16xf32>
    %9 = vector.multi_reduction <maximumf>, %8, %cst_9 [1] : vector<16x3xf32> to vector<16xf32>
    %10 = vector.shape_cast %9 : vector<16xf32> to vector<16x1xf32>
    %11 = arith.maximumf %6, %10 : vector<16x1xf32>
    %12 = arith.subf %6, %11 : vector<16x1xf32>
    %13 = math.exp %12 : vector<16x1xf32>
    %14 = vector.broadcast %11 : vector<16x1xf32> to vector<16x3xf32>
    %15 = arith.subf %8, %14 : vector<16x3xf32>
    %16 = math.exp %15 : vector<16x3xf32>
    %cst_10 = arith.constant dense<0.000000e+00> : vector<16xf32>
    %17 = vector.multi_reduction <add>, %16, %cst_10 [1] : vector<16x3xf32> to vector<16xf32>
    %18 = vector.shape_cast %17 : vector<16xf32> to vector<16x1xf32>
    %19 = arith.addf %13, %18 : vector<16x1xf32>
    %20 = math.log %19 : vector<16x1xf32>
    %21 = arith.addf %20, %11 : vector<16x1xf32>
    %22 = arith.subf %21, %6 : vector<16x1xf32>
    %c0_11 = arith.constant 0 : index
    %c0_12 = arith.constant 0 : index
    %23 = vector.load %arg5[%c0_11, %c0_12] : memref<16x1xf32, #tpu.memory_space<vmem>>, vector<16x1xf32>
    tpu.vector_store %arg5[%c0_11, %c0_12], %22 {strides = array<i32>} : memref<16x1xf32, #tpu.memory_space<vmem>>, vector<16x1xf32>,
    return
  }
  func.func @transform_0(%arg0: i32) -> (i32, i32) {
    %c0_i32 = arith.constant 0 : i32
    %c0_i32_0 = arith.constant 0 : i32
    return %arg0, %c0_i32 : i32, i32
  }
  func.func @transform_1(%arg0: i32) -> (i32, i32) {
    %c0_i32 = arith.constant 0 : i32
    %c0_i32_0 = arith.constant 0 : i32
    return %arg0, %c0_i32 : i32, i32
  }
  func.func @transform_2(%arg0: i32) -> (i32, i32) {
    %c0_i32 = arith.constant 0 : i32
    %c0_i32_0 = arith.constant 0 : i32
    %c0_i32_1 = arith.constant 0 : i32
    return %c0_i32, %c0_i32_0 : i32, i32
  }
  func.func @transform_3(%arg0: i32) -> (i32, i32) {
    %c0_i32 = arith.constant 0 : i32
    %c0_i32_0 = arith.constant 0 : i32
    %c0_i32_1 = arith.constant 0 : i32
    return %c0_i32, %c0_i32_0 : i32, i32
  }
  func.func @transform_4(%arg0: i32) -> (i32, i32) {
    %c0_i32 = arith.constant 0 : i32
    %c0_i32_0 = arith.constant 0 : i32
    return %arg0, %c0_i32 : i32, i32
  }
}

</mosaic_0001>

<llo_original>
// kernel: tpu_custom_call.1
$region0: #{tpu_custom_call.1}
  #allocation0 [shape = 'u32[]', space=smem, size = 0x4, offset = 0x4, fixed_abs, tag = 'smem constant byte address 0x4 - core index']
  #allocation1 [shape = 'u32[144,128]{1,0:T(1,128)}', space=vmem, size = 0x12000, scoped, tag = 'internal scratch']
  %s0 = inlined_call_operand.hbm [shape: f32[16,32], index: 0, kind: input, shape index: {}]
  %s1 = inlined_call_operand.hbm [shape: f32[16,32], index: 1, kind: input, shape index: {}]
  %s2 = inlined_call_operand.hbm [shape: f32[32,32], index: 2, kind: input, shape index: {}]
  %s3 = inlined_call_operand.vmem [shape: f32[3,32], index: 3, kind: input, shape index: {}]
  %s4 = inlined_call_operand.vmem [shape: f32[16,1], index: 4, kind: output, shape index: {}]
  %s5 = sld [smem:[#allocation0]]
  $region38: #{tpu_custom_call.1} parent=0
    _
  %s7 = ssub.s32 1, %s5
  %s8 = scalar_select 0, %s7, %s5
  $region1: #{tpu_custom_call.1} parent=0
    #allocation2 [shape = 'u8[8192]{0}', space=vmem, size = 0x2000, scoped, tag = 'input window, operand 0, single buffered']
    #allocation3 [shape = 's32[1]{0}', space=sflag, size = 0x4, scoped, tag = 'scoped memory for tpu_custom_call.1']
    #allocation4 [shape = 'u8[8192]{0}', space=vmem, size = 0x2000, scoped, tag = 'input window, operand 1, single buffered']
    #allocation5 [shape = 's32[1]{0}', space=sflag, size = 0x4, scoped, tag = 'scoped memory for tpu_custom_call.1']
    #allocation6 [shape = 'u8[16384]{0}', space=vmem, size = 0x4000, scoped, tag = 'input window, operand 2, single buffered']
    %9 = vsyncpa [#allocation3], 0
    %10 = vsyncpa [#allocation5], 0
    // Predicated region
    $region2: #{tpu_custom_call.1} parent=1 // pred_check
      _
    $region3: #{tpu_custom_call.1} parent=1 // pred_check_branch
      %12 = sbr.rel (0) target = $region5
    $region4: #{tpu_custom_call.1} parent=1 // pred_region
      %s14 = ssub.s32 256, 256
      %15 = vsyncadd [#allocation3], %s14
      %s16 = sshll.u32 [#allocation2], 4
      %s17 = int_to_ptr.vmem [resolvable:$true] %s16
      %22 = dma.hbm_to_vmem [thread:$0]  %s0, 256, %s17, [#allocation3], 128, 128, 8
    $region5: #{tpu_custom_call.1} parent=1 // pred_fallthru
      _
    // Predicated region
    $region6: #{tpu_custom_call.1} parent=1 // pred_check
      _
    $region7: #{tpu_custom_call.1} parent=1 // pred_check_branch
      %24 = sbr.rel (0) target = $region9
    $region8: #{tpu_custom_call.1} parent=1 // pred_region
      %s26 = ssub.s32 256, 256
      %27 = vsyncadd [#allocation5], %s26
      %s28 = sshll.u32 [#allocation4], 4
      %s29 = int_to_ptr.vmem [resolvable:$true] %s28
      %34 = dma.hbm_to_vmem [thread:$0]  %s1, 256, %s29, [#allocation5], 128, 128, 8
    $region9: #{tpu_custom_call.1} parent=1 // pred_fallthru
      _
    // Predicated region
    $region10: #{tpu_custom_call.1} parent=1 // pred_check
      _
    $region11: #{tpu_custom_call.1} parent=1 // pred_check_branch
      %36 = sbr.rel (0) target = $region13
    $region12: #{tpu_custom_call.1} parent=1 // pred_region
      %s38 = ssub.s32 512, 512
      %39 = vsyncadd [#allocation5], %s38
      %s40 = sshll.u32 [#allocation6], 4
      %s41 = int_to_ptr.vmem [resolvable:$true] %s40
      %46 = dma.hbm_to_vmem [thread:$0]  %s2, 512, %s41, [#allocation5], 128, 128, 8
    $region13: #{tpu_custom_call.1} parent=1 // pred_fallthru
      _
    // Predicated region
    $region14: #{tpu_custom_call.1} parent=1 // pred_check
      _
    $region15: #{tpu_custom_call.1} parent=1 // pred_check_branch
      %48 = sbr.rel (0) target = $region17
    $region16: #{tpu_custom_call.1} parent=1 // pred_region
      _
    $region17: #{tpu_custom_call.1} parent=1 // pred_fallthru
      _
    // Predicated region
    $region18: #{tpu_custom_call.1} parent=1 // pred_check
      _
    $region19: #{tpu_custom_call.1} parent=1 // pred_check_branch
      %50 = sbr.rel (0) target = $region21
    $region20: #{tpu_custom_call.1} parent=1 // pred_region
      %51 = dma.done [#allocation3], 256
    $region21: #{tpu_custom_call.1} parent=1 // pred_fallthru
      _
    // Predicated region
    $region22: #{tpu_custom_call.1} parent=1 // pred_check
      _
    $region23: #{tpu_custom_call.1} parent=1 // pred_check_branch
      %53 = sbr.rel (0) target = $region25
    $region24: #{tpu_custom_call.1} parent=1 // pred_region
      %54 = dma.done [#allocation5], 256
    $region25: #{tpu_custom_call.1} parent=1 // pred_fallthru
      _
    // Predicated region
    $region26: #{tpu_custom_call.1} parent=1 // pred_check
      _
    $region27: #{tpu_custom_call.1} parent=1 // pred_check_branch
      %56 = sbr.rel (0) target = $region29
    $region28: #{tpu_custom_call.1} parent=1 // pred_region
      %57 = dma.done [#allocation5], 512
    $region29: #{tpu_custom_call.1} parent=1 // pred_fallthru
      _
    %v58 = vld [vmem:[#allocation4] sm:$0xff]
    %v59 = vld [vmem:[#allocation4 + $0x8] sm:$0xff]
    %v60 = vld [vmem:[#allocation6] sm:$0xff]
    %v61 = vld [vmem:[#allocation6 + $0x8] sm:$0xff]
    %v62 = vld [vmem:[#allocation6 + $0x10] sm:$0xff]
    %v63 = vld [vmem:[#allocation6 + $0x18] sm:$0xff]
    %vm64 = vcmask 261120
    %v66 = vsel %vm64, %v58, 0
    %v69 = vsel %vm64, %v59, 0
    %71 = vmatprep.subr.mxu0 0.0
    %72 = vmatpush1.msra.mxu0 %v60
    %73 = vmatprep.subr.mxu0 0.0
    %74 = vmatpush1.msra.mxu0 %v61
    %75 = vmatprep.subr.mxu0 0.0
    %76 = vmatpush1.msra.mxu0 %v62
    %77 = vmatprep.subr.mxu0 0.0
    %78 = vmatpush1.msra.mxu0 %v63
    %79 = vmatprep.subr.mxu0 0.0
    %80 = vmatpush1.msra.mxu0 0.0
    %81 = vmatprep.subr.mxu0 0.0
    %82 = vmatpush1.msra.mxu0 0.0
    %83 = vmatprep.subr.mxu0 0.0
    %84 = vmatpush1.msra.mxu0 0.0
    %85 = vmatprep.subr.mxu0 0.0
    %86 = vmatpush1.msra.mxu0 0.0
    %87 = vmatprep.subr.mxu0 0.0
    %88 = vmatpush1.msra.mxu0 0.0
    %89 = vmatprep.subr.mxu0 0.0
    %90 = vmatpush1.msra.mxu0 0.0
    %91 = vmatprep.subr.mxu0 0.0
    %92 = vmatpush1.msra.mxu0 0.0
    %93 = vmatprep.subr.mxu0 0.0
    %94 = vmatpush1.msra.mxu0 0.0
    %95 = vmatprep.subr.mxu0 0.0
    %96 = vmatpush1.msra.mxu0 0.0
    %97 = vmatprep.subr.mxu0 0.0
    %98 = vmatpush1.msra.mxu0 0.0
    %99 = vmatprep.subr.mxu0 0.0
    %100 = vmatpush1.msra.mxu0 0.0
    %101 = vmatprep.subr.mxu0 0.0
    %102 = vmatpush1.msra.mxu0 0.0
    %103 = vmatprep.subr.mxu0 0.0
    %104 = vmatpush1.msra.mxu0 0.0
    %105 = vmatprep.subr.mxu0 0.0
    %106 = vmatpush1.msra.mxu0 0.0
    %107 = vmatprep.subr.mxu0 0.0
    %108 = vmatpush1.msra.mxu0 0.0
    %109 = vmatprep.subr.mxu0 0.0
    %110 = vmatpush1.msra.mxu0 0.0
    %111 = vmatprep.subr.mxu0 0.0
    %112 = vmatpush1.msra.mxu0 0.0
    %113 = vmatprep.subr.mxu0 0.0
    %114 = vmatpush1.msra.mxu0 0.0
    %115 = vmatprep.subr.mxu0 0.0
    %116 = vmatpush1.msra.mxu0 0.0
    %117 = vmatprep.subr.mxu0 0.0
    %118 = vmatpush1.msra.mxu0 0.0
    %119 = vmatprep.subr.mxu0 0.0
    %120 = vmatpush1.msra.mxu0 0.0
    %121 = vmatprep.subr.mxu0 0.0
    %122 = vmatpush1.msra.mxu0 0.0
    %123 = vmatprep.subr.mxu0 0.0
    %124 = vmatpush1.msra.mxu0 0.0
    %125 = vmatprep.subr.mxu0 0.0
    %126 = vmatpush1.msra.mxu0 0.0
    %127 = vmatprep.subr.mxu0 0.0
    %128 = vmatpush1.msra.mxu0 0.0
    %129 = vmatprep.subr.mxu0 0.0
    %130 = vmatpush1.msra.mxu0 0.0
    %131 = vmatprep.subr.mxu0 0.0
    %132 = vmatpush1.msra.mxu0 0.0
    %133 = vmatprep.subr.mxu0 0.0
    %134 = vmatpush1.msra.mxu0 0.0
    %135 = vmatprep.mubr.f32.mxu0 0.0
    %136 = vmatmul.mubr.f32.gmra.mrb[0].mxu0 %v66
    %v137 = vpop.f32.mrb[0].mxu0
    %v138 = vadd.f32 0.0, %v137
    %v139 = vpop.f32.mrb[0].mxu0
    %140 = vmatprep.mubr.f32.mxu0 0.0
    %141 = vmatmul.mubr.f32.gmra.mrb[0].mxu0 %v69
    %v142 = vpop.f32.mrb[0].mxu0
    %v143 = vadd.f32 0.0, %v142
    %v144 = vpop.f32.mrb[0].mxu0
    %145 = vdwg.mxu0
    %v146 = vld [vmem:[#allocation2] sm:$0xff]
    %v147 = vld [vmem:[#allocation2 + $0x8] sm:$0xff]
    %v148 = vmul.f32 %v138, %v146
    %v149 = vmul.f32 %v143, %v147
    %v150 = vsel %vm64, %v148, 0.0
    %151 = vadd.xlane.f32.xlu0 %v150
    %v152 = vpop.xlane.xlu0 %151
    %v153 = vsel %vm64, %v149, 0.0
    %154 = vadd.xlane.f32.xlu0 %v153
    %v155 = vpop.xlane.xlu0 %154
    %v156 = vld [vmem:[%s3] sm:$0x7]
    %v158 = vsel %vm64, %v138, 0
    %v161 = vsel %vm64, %v143, 0
    %v164 = vsel %vm64, %v156, 0
    %166 = vmatprep.subr.mxu0 0.0
    %167 = vmatpush1.xpose.msra.mxu0 %v164
    %168 = vmatprep.subr.mxu0 0.0
    %169 = vmatpush1.xpose.msra.mxu0 0.0
    %170 = vmatprep.subr.mxu0 0.0
    %171 = vmatpush1.xpose.msra.mxu0 0.0
    %172 = vmatprep.subr.mxu0 0.0
    %173 = vmatpush1.xpose.msra.mxu0 0.0
    %174 = vmatprep.subr.mxu0 0.0
    %175 = vmatpush1.xpose.msra.mxu0 0.0
    %176 = vmatprep.subr.mxu0 0.0
    %177 = vmatpush1.xpose.msra.mxu0 0.0
    %178 = vmatprep.subr.mxu0 0.0
    %179 = vmatpush1.xpose.msra.mxu0 0.0
    %180 = vmatprep.subr.mxu0 0.0
    %181 = vmatpush1.xpose.msra.mxu0 0.0
    %182 = vmatprep.subr.mxu0 0.0
    %183 = vmatpush1.xpose.msra.mxu0 0.0
    %184 = vmatprep.subr.mxu0 0.0
    %185 = vmatpush1.xpose.msra.mxu0 0.0
    %186 = vmatprep.subr.mxu0 0.0
    %187 = vmatpush1.xpose.msra.mxu0 0.0
    %188 = vmatprep.subr.mxu0 0.0
    %189 = vmatpush1.xpose.msra.mxu0 0.0
    %190 = vmatprep.subr.mxu0 0.0
    %191 = vmatpush1.xpose.msra.mxu0 0.0
    %192 = vmatprep.subr.mxu0 0.0
    %193 = vmatpush1.xpose.msra.mxu0 0.0
    %194 = vmatprep.subr.mxu0 0.0
    %195 = vmatpush1.xpose.msra.mxu0 0.0
    %196 = vmatprep.subr.mxu0 0.0
    %197 = vmatpush1.xpose.msra.mxu0 0.0
    %198 = vmatprep.subr.mxu0 0.0
    %199 = vmatpush1.xpose.msra.mxu0 0.0
    %200 = vmatprep.subr.mxu0 0.0
    %201 = vmatpush1.xpose.msra.mxu0 0.0
    %202 = vmatprep.subr.mxu0 0.0
    %203 = vmatpush1.xpose.msra.mxu0 0.0
    %204 = vmatprep.subr.mxu0 0.0
    %205 = vmatpush1.xpose.msra.mxu0 0.0
    %206 = vmatprep.subr.mxu0 0.0
    %207 = vmatpush1.xpose.msra.mxu0 0.0
    %208 = vmatprep.subr.mxu0 0.0
    %209 = vmatpush1.xpose.msra.mxu0 0.0
    %210 = vmatprep.subr.mxu0 0.0
    %211 = vmatpush1.xpose.msra.mxu0 0.0
    %212 = vmatprep.subr.mxu0 0.0
    %213 = vmatpush1.xpose.msra.mxu0 0.0
    %214 = vmatprep.subr.mxu0 0.0
    %215 = vmatpush1.xpose.msra.mxu0 0.0
    %216 = vmatprep.subr.mxu0 0.0
    %217 = vmatpush1.xpose.msra.mxu0 0.0
    %218 = vmatprep.subr.mxu0 0.0
    %219 = vmatpush1.xpose.msra.mxu0 0.0
    %220 = vmatprep.subr.mxu0 0.0
    %221 = vmatpush1.xpose.msra.mxu0 0.0
    %222 = vmatprep.subr.mxu0 0.0
    %223 = vmatpush1.xpose.msra.mxu0 0.0
    %224 = vmatprep.subr.mxu0 0.0
    %225 = vmatpush1.xpose.msra.mxu0 0.0
    %226 = vmatprep.subr.mxu0 0.0
    %227 = vmatpush1.xpose.msra.mxu0 0.0
    %228 = vmatprep.subr.mxu0 0.0
    %229 = vmatpush1.xpose.msra.mxu0 0.0
    %230 = vmatprep.mubr.f32.mxu0 0.0
    %231 = vmatmul.mubr.f32.gmra.mrb[0].mxu0 %v158
    %v232 = vpop.f32.mrb[0].mxu0
    %v233 = vadd.f32 0.0, %v232
    %v234 = vpop.f32.mrb[0].mxu0
    %235 = vmatprep.mubr.f32.mxu0 0.0
    %236 = vmatmul.mubr.f32.gmra.mrb[0].mxu0 %v161
    %v237 = vpop.f32.mrb[0].mxu0
    %v238 = vadd.f32 0.0, %v237
    %v239 = vpop.f32.mrb[0].mxu0
    %240 = vdwg.mxu0
    %vm241 = vcmask 23552
    %v242 = vsel %vm241, %v233, -inf
    %243 = vmax.xlane.f32.xlu0 %v242
    %v244 = vpop.xlane.xlu0 %243
    %v245 = vsel %vm241, %v238, -inf
    %246 = vmax.xlane.f32.xlu0 %v245
    %v247 = vpop.xlane.xlu0 %246
    %v248 = vmax.f32 %v152, %v244
    %v249 = vmax.f32 %v155, %v247
    %v250 = vsub.f32 %v152, %v248
    %v251 = vsub.f32 %v155, %v249
    %v252 = vmul.f32 %v250, 1.442695
    %v253 = vpow.pop %v252
    %v254 = vmul.f32 %v251, 1.442695
    %v255 = vpow.pop %v254
    %v256 = vsub.f32 %v233, %v248
    %v257 = vsub.f32 %v238, %v249
    %v258 = vmul.f32 %v256, 1.442695
    %v259 = vpow.pop %v258
    %v260 = vmul.f32 %v257, 1.442695
    %v261 = vpow.pop %v260
    %v262 = vsel %vm241, %v259, 0.0
    %263 = vadd.xlane.f32.xlu0 %v262
    %v264 = vpop.xlane.xlu0 %263
    %v265 = vsel %vm241, %v261, 0.0
    %266 = vadd.xlane.f32.xlu0 %v265
    %v267 = vpop.xlane.xlu0 %266
    %v268 = vadd.f32 %v253, %v264
    %v269 = vadd.f32 %v255, %v267
    %v270 = vlog2.pop %v268
    %v271 = vmul.f32 %v270, 0.6931472
    %v272 = vlog2.pop %v269
    %v273 = vmul.f32 %v272, 0.6931472
    %v274 = vadd.f32 %v271, %v248
    %v275 = vadd.f32 %v273, %v249
    %v276 = vsub.f32 %v274, %v152
    %v277 = vsub.f32 %v275, %v155
    %vm278 = vcmask 7168
    %279 = vst.msk [vmem:[%s4] sm:$0xff] %vm278, %v276
    %280 = vst.msk [vmem:[%s4 + $0x8] sm:$0xff] %vm278, %v277
    // Predicated region
    $region30: #{tpu_custom_call.1} parent=1 // pred_check
      _
    $region31: #{tpu_custom_call.1} parent=1 // pred_check_branch
      %282 = sbr.rel (0) target = $region33
    $region32: #{tpu_custom_call.1} parent=1 // pred_region
      _
    $region33: #{tpu_custom_call.1} parent=1 // pred_fallthru
      _
    // Predicated region
    $region34: #{tpu_custom_call.1} parent=1 // pred_check
      _
    $region35: #{tpu_custom_call.1} parent=1 // pred_check_branch
      %284 = sbr.rel (0) target = $region37
    $region36: #{tpu_custom_call.1} parent=1 // pred_region
      _
    $region37: #{tpu_custom_call.1} parent=1 // pred_fallthru
      _
    %285 = vsyncpa [#allocation3], 1
    %286 = vsyncpa [#allocation5], 1

</llo_original>
